<compile_context>
chip_gen: v6e
topology: v6e:2x2x1
jax: 0.10.0
libtpu: 0.0.40
codegen_flags: <defaults>
</compile_context>

<pallas_src>
import jax
import jax.numpy as jnp
from jax import lax
from jax.experimental import pallas as pl
from jax.experimental.pallas import tpu as pltpu


def _round_up(x, m):
    return (x + m - 1) // m * m


def decoder_kernel(x_ref, w1_ref, b1_ref, w2_ref, b2_ref, o_ref, h_ref):
    """One (batch-tile i, output-column-tile j) grid step.

    The hidden activation only depends on the batch tile, so it is computed once at
    j == 0 and cached in the VMEM scratch h_ref for the remaining output-column tiles.
    """

    @pl.when(pl.program_id(1) == 0)
    def _():
        # Cast x on the VPU (near-free); HBM stream stays in the caller's dtype.
        x = x_ref[...].astype(w1_ref.dtype)
        h = jnp.dot(x, w1_ref[...], preferred_element_type=jnp.float32) + b1_ref[...]

        # LayerNorm (no affine, eps=1e-5), single-pass statistics in f32.
        inv_n = 1.0 / h.shape[-1]
        s1 = jnp.sum(h, axis=-1, keepdims=True)
        s2 = jnp.sum(h * h, axis=-1, keepdims=True)
        mean = s1 * inv_n
        var = jnp.maximum(s2 * inv_n - mean * mean, 0.0)
        h = (h - mean) * lax.rsqrt(var + 1e-5)

        # LeakyReLU(0.01).
        h = jnp.maximum(h, 0.01 * h)
        # TODO(synk): dropout_rate=0.1 is a no-op in eval mode; not applied here.
        h_ref[...] = h.astype(h_ref.dtype)

    # recon_decoder: Linear(n_hidden, n_output), column tile j.
    out = jnp.dot(h_ref[...], w2_ref[...], preferred_element_type=jnp.float32)
    o_ref[...] = (out + b2_ref[...]).astype(o_ref.dtype)


def prepare_decoder_params(w1, b1, w2, b2, compute_dtype=jnp.bfloat16):
    """Hoist the per-call weight transposes / casts (PyTorch nn.Linear layout in).

    w1: [n_hidden, n_input], b1: [n_hidden], w2: [n_output, n_hidden], b2: [n_output].
    compute_dtype=bfloat16 halves weight HBM traffic; pass jnp.float32 to opt out of
    the precision trade.
    """
    return dict(
        w1t=jnp.asarray(w1).T.astype(compute_dtype),          # [n_input, n_hidden]
        b1=jnp.asarray(b1).reshape(1, -1).astype(jnp.float32),
        w2t=jnp.asarray(w2).T.astype(compute_dtype),           # [n_hidden, n_output]
        b2=jnp.asarray(b2).reshape(1, -1).astype(jnp.float32),
    )


def decoder_forward(x, params, *, out_dtype=None, max_tile_b=2048, max_tile_n=2048,
                    vmem_budget_bytes=24 * 1024 * 1024):
    """Forward pass of multigrate Decoder (loss='mse'), eval mode.  x: [B, n_input]."""
    w1t, b1, w2t, b2 = params["w1t"], params["b1"], params["w2t"], params["b2"]
    B, n_input = x.shape
    n_in_w, n_hidden = w1t.shape
    n_hidden2, n_output = w2t.shape
    assert n_in_w == n_input and n_hidden2 == n_hidden
    out_dtype = x.dtype if out_dtype is None else out_dtype

    x_bytes = jnp.dtype(x.dtype).itemsize
    w_bytes = jnp.dtype(w1t.dtype).itemsize
    o_bytes = jnp.dtype(out_dtype).itemsize

    # Output-column tiling: full n_output when it fits, otherwise a multiple of 128
    # (lane-dense stores, bounded out/W2 VMEM — matters on v7x's 64 MiB).
    tile_n = n_output if n_output <= max_tile_n else max_tile_n

    # Batch tiling from a VMEM byte budget: double-buffered x/out/W2/bias blocks,
    # plus the h scratch, capped at max_tile_b and capped so the "parallel" batch
    # axis has >= 2 grid steps whenever the batch allows (both v7x TensorCores busy).
    resident = (2 * (n_input * n_hidden + n_hidden * tile_n) * w_bytes
                + 2 * (n_hidden + tile_n) * 4)
    per_row = 2 * n_input * x_bytes + n_hidden * w_bytes + 2 * tile_n * o_bytes
    tile_b = max(8, min(max_tile_b, (vmem_budget_bytes - resident) // per_row) // 8 * 8)
    if B >= 16:
        tile_b = min(tile_b, _round_up(pl.cdiv(B, 2), 8))
    tile_b = min(tile_b, _round_up(B, 8))

    grid = (pl.cdiv(B, tile_b), pl.cdiv(n_output, tile_n))

    cost = pl.CostEstimate(
        flops=2 * B * (n_input * n_hidden + n_hidden * n_output),
        transcendentals=B,  # one rsqrt per row
        bytes_accessed=(B * n_input * x_bytes
                        + (n_input * n_hidden + n_hidden * n_output) * w_bytes
                        + (n_hidden + n_output) * 4
                        + B * n_output * o_bytes),
    )

    return pl.pallas_call(
        decoder_kernel,
        out_shape=jax.ShapeDtypeStruct((B, n_output), out_dtype),
        grid_spec=pltpu.PrefetchScalarGridSpec(
            num_scalar_prefetch=0,
            grid=grid,
            in_specs=[
                pl.BlockSpec((tile_b, n_input), lambda i, j: (i, 0)),
                pl.BlockSpec((n_input, n_hidden), lambda i, j: (0, 0)),
                pl.BlockSpec((1, n_hidden), lambda i, j: (0, 0)),
                pl.BlockSpec((n_hidden, tile_n), lambda i, j: (0, j)),
                pl.BlockSpec((1, tile_n), lambda i, j: (0, j)),
            ],
            out_specs=pl.BlockSpec((tile_b, tile_n), lambda i, j: (i, j)),
            scratch_shapes=[pltpu.VMEM((tile_b, n_hidden), w1t.dtype)],
        ),
        compiler_params=pltpu.CompilerParams(
            dimension_semantics=("parallel", "arbitrary"),
            vmem_limit_bytes=32 * 1024 * 1024,
        ),
        cost_estimate=cost,
    )(x, w1t, b1, w2t, b2)


def decoder_reference(x, w1, b1, w2, b2):
    h = x @ w1.T + b1
    mean = jnp.mean(h, axis=-1, keepdims=True)
    var = jnp.mean((h - mean) ** 2, axis=-1, keepdims=True)
    h = (h - mean) / jnp.sqrt(var + 1e-5)
    h = jnp.where(h > 0, h, 0.01 * h)
    return h @ w2.T + b2


def _make_case(key, B, n_input, n_hidden, n_output):
    k_x, k_w1, k_b1, k_w2, k_b2 = jax.random.split(key, 5)
    x = jax.random.normal(k_x, (B, n_input), dtype=jnp.float32)
    # nn.Linear layouts: weight [out, in], bias [out].
    w1 = 0.05 * jax.random.normal(k_w1, (n_hidden, n_input), dtype=jnp.float32)
    b1 = 0.05 * jax.random.normal(k_b1, (n_hidden,), dtype=jnp.float32)
    w2 = 0.05 * jax.random.normal(k_w2, (n_output, n_hidden), dtype=jnp.float32)
    b2 = 0.05 * jax.random.normal(k_b2, (n_output,), dtype=jnp.float32)
    return x, w1, b1, w2, b2


if __name__ == "__main__":
    key = jax.random.PRNGKey(0)
    k1, k2 = jax.random.split(key)
    tol = 3e-2  # bf16 MXU inputs; LayerNorm stats and accumulation stay in f32.

    # Case 1: module-default small shapes (n_hidden fixed at 128 by the module default).
    x, w1, b1, w2, b2 = _make_case(k1, B=8, n_input=32, n_hidden=128, n_output=64)
    params = prepare_decoder_params(w1, b1, w2, b2)
    out = jax.block_until_ready(decoder_forward(x, params))
    ref = decoder_reference(x, w1, b1, w2, b2)
    assert out.shape == ref.shape
    assert jnp.allclose(out, ref, atol=tol, rtol=tol), "case 1 mismatch vs reference"

    # Case 2: ragged batch / multi-step grid (exercises cdiv edge block + 2 batch tiles).
    x, w1, b1, w2, b2 = _make_case(k2, B=20, n_input=48, n_hidden=128, n_output=200)
    params = prepare_decoder_params(w1, b1, w2, b2)
    out = jax.block_until_ready(decoder_forward(x, params))
    ref = decoder_reference(x, w1, b1, w2, b2)
    assert out.shape == ref.shape
    assert jnp.allclose(out, ref, atol=tol, rtol=tol), "case 2 mismatch vs reference"

    print("KERNEL_OK")
</pallas_src>

<mosaic_0001>
module attributes {stable_mosaic.version = 11 : i64} {
  func.func @decoder_kernel(%arg0: i32, %arg1: i32, %arg2: memref<8x32xf32, #tpu.memory_space<vmem>>, %arg3: memref<32x128xbf16, #tpu.memory_space<vmem>>, %arg4: memref<1x128xf32, #tpu.memory_space<vmem>>, %arg5: memref<128x64xbf16, #tpu.memory_space<vmem>>, %arg6: memref<1x64xf32, #tpu.memory_space<vmem>>, %arg7: memref<8x64xf32, #tpu.memory_space<vmem>>, %arg8: memref<8x128xbf16, #tpu.memory_space<vmem>>) attributes {dimension_semantics = [#tpu.dimension_semantics<parallel>, #tpu.dimension_semantics<arbitrary>], iteration_bounds = array<i64: 1, 1>, scalar_prefetch = 0 : i64, scratch_operands = 1 : i64, tpu.core_type = #tpu.core_type<tc>, window_params = [{transform_indices = @transform_0, window_bounds = array<i64: 8, 32>}, {pipeline_mode = #tpu.pipeline_mode<synchronous>, transform_indices = @transform_1, window_bounds = array<i64: 32, 128>}, {pipeline_mode = #tpu.pipeline_mode<synchronous>, transform_indices = @transform_2, window_bounds = array<i64: 1, 128>}, {transform_indices = @transform_3, window_bounds = array<i64: 128, 64>}, {transform_indices = @transform_4, window_bounds = array<i64: 1, 64>}, {transform_indices = @transform_5, window_bounds = array<i64: 8, 64>}]} {
    %c0_i32 = arith.constant 0 : i32
    %0 = arith.cmpi eq, %arg1, %c0_i32 : i32
    %1 = arith.extui %0 : i1 to i32
    %c0_i32_0 = arith.constant 0 : i32
    %2 = arith.cmpi ne, %1, %c0_i32_0 : i32
    scf.if %2 {
      %c0_8 = arith.constant 0 : index
      %c0_9 = arith.constant 0 : index
      %10 = vector.load %arg2[%c0_8, %c0_9] : memref<8x32xf32, #tpu.memory_space<vmem>>, vector<8x32xf32>
      %11 = arith.truncf %10 : vector<8x32xf32> to vector<8x32xbf16>
      %c0_10 = arith.constant 0 : index
      %c0_11 = arith.constant 0 : index
      %12 = vector.load %arg3[%c0_10, %c0_11] : memref<32x128xbf16, #tpu.memory_space<vmem>>, vector<32x128xbf16>
      %cst_12 = arith.constant dense<0.000000e+00> : vector<8x128xf32>
      %13 = tpu.matmul %11, %12, %cst_12 {dimension_numbers = #tpu.dot_dimension_numbers<[1], [0], [0], [1], [0, 0, 1, 1], [], []>} : vector<8x32xbf16>, vector<32x128xbf16>, vector<8x128xf32> -> vector<8x128xf32>
      %c0_13 = arith.constant 0 : index
      %c0_14 = arith.constant 0 : index
      %14 = vector.load %arg4[%c0_13, %c0_14] : memref<1x128xf32, #tpu.memory_space<vmem>>, vector<1x128xf32>
      %15 = vector.broadcast %14 : vector<1x128xf32> to vector<8x128xf32>
      %16 = arith.addf %13, %15 : vector<8x128xf32>
      %cst_15 = arith.constant dense<0.000000e+00> : vector<8xf32>
      %17 = vector.multi_reduction <add>, %16, %cst_15 [1] : vector<8x128xf32> to vector<8xf32>
      %18 = vector.shape_cast %17 : vector<8xf32> to vector<8x1xf32>
      %19 = arith.mulf %16, %16 : vector<8x128xf32>
      %cst_16 = arith.constant dense<0.000000e+00> : vector<8xf32>
      %20 = vector.multi_reduction <add>, %19, %cst_16 [1] : vector<8x128xf32> to vector<8xf32>
      %21 = vector.shape_cast %20 : vector<8xf32> to vector<8x1xf32>
      %cst_17 = arith.constant 7.812500e-03 : f32
      %22 = vector.broadcast %cst_17 : f32 to vector<8x1xf32>
      %23 = arith.mulf %18, %22 : vector<8x1xf32>
      %cst_18 = arith.constant 7.812500e-03 : f32
      %24 = vector.broadcast %cst_18 : f32 to vector<8x1xf32>
      %25 = arith.mulf %21, %24 : vector<8x1xf32>
      %26 = arith.mulf %23, %23 : vector<8x1xf32>
      %27 = arith.subf %25, %26 : vector<8x1xf32>
      %cst_19 = arith.constant 0.000000e+00 : f32
      %28 = vector.broadcast %cst_19 : f32 to vector<8x1xf32>
      %29 = arith.maximumf %27, %28 : vector<8x1xf32>
      %30 = vector.broadcast %23 : vector<8x1xf32> to vector<8x128xf32>
      %31 = arith.subf %16, %30 : vector<8x128xf32>
      %cst_20 = arith.constant 9.99999974E-6 : f32
      %32 = vector.broadcast %cst_20 : f32 to vector<8x1xf32>
      %33 = arith.addf %29, %32 : vector<8x1xf32>
      %34 = math.rsqrt %33 : vector<8x1xf32>
      %35 = vector.broadcast %34 : vector<8x1xf32> to vector<8x128xf32>
      %36 = arith.mulf %31, %35 : vector<8x128xf32>
      %cst_21 = arith.constant 0.00999999977 : f32
      %37 = vector.broadcast %cst_21 : f32 to vector<8x128xf32>
      %38 = arith.mulf %37, %36 : vector<8x128xf32>
      %39 = arith.maximumf %36, %38 : vector<8x128xf32>
      %40 = arith.truncf %39 : vector<8x128xf32> to vector<8x128xbf16>
      %c0_22 = arith.constant 0 : index
      %c0_23 = arith.constant 0 : index
      %41 = vector.load %arg8[%c0_22, %c0_23] : memref<8x128xbf16, #tpu.memory_space<vmem>>, vector<8x128xbf16>
      tpu.vector_store %arg8[%c0_22, %c0_23], %40 {strides = array<i32>} : memref<8x128xbf16, #tpu.memory_space<vmem>>, vector<8x128xbf16>,
    } else {
    }
    %c0 = arith.constant 0 : index
    %c0_1 = arith.constant 0 : index
    %3 = vector.load %arg8[%c0, %c0_1] : memref<8x128xbf16, #tpu.memory_space<vmem>>, vector<8x128xbf16>
    %c0_2 = arith.constant 0 : index
    %c0_3 = arith.constant 0 : index
    %4 = vector.load %arg5[%c0_2, %c0_3] : memref<128x64xbf16, #tpu.memory_space<vmem>>, vector<128x64xbf16>
    %cst = arith.constant dense<0.000000e+00> : vector<8x64xf32>
    %5 = tpu.matmul %3, %4, %cst {dimension_numbers = #tpu.dot_dimension_numbers<[1], [0], [0], [1], [0, 0, 1, 1], [], []>} : vector<8x128xbf16>, vector<128x64xbf16>, vector<8x64xf32> -> vector<8x64xf32>
    %c0_4 = arith.constant 0 : index
    %c0_5 = arith.constant 0 : index
    %6 = vector.load %arg6[%c0_4, %c0_5] : memref<1x64xf32, #tpu.memory_space<vmem>>, vector<1x64xf32>
    %7 = vector.broadcast %6 : vector<1x64xf32> to vector<8x64xf32>
    %8 = arith.addf %5, %7 : vector<8x64xf32>
    %c0_6 = arith.constant 0 : index
    %c0_7 = arith.constant 0 : index
    %9 = vector.load %arg7[%c0_6, %c0_7] : memref<8x64xf32, #tpu.memory_space<vmem>>, vector<8x64xf32>
    tpu.vector_store %arg7[%c0_6, %c0_7], %8 {strides = array<i32>} : memref<8x64xf32, #tpu.memory_space<vmem>>, vector<8x64xf32>,
    return
  }
  func.func @transform_0(%arg0: i32, %arg1: i32) -> (i32, i32) {
    %c0_i32 = arith.constant 0 : i32
    %c0_i32_0 = arith.constant 0 : i32
    return %arg0, %c0_i32 : i32, i32
  }
  func.func @transform_1(%arg0: i32, %arg1: i32) -> (i32, i32) {
    %c0_i32 = arith.constant 0 : i32
    %c0_i32_0 = arith.constant 0 : i32
    %c0_i32_1 = arith.constant 0 : i32
    return %c0_i32, %c0_i32_0 : i32, i32
  }
  func.func @transform_2(%arg0: i32, %arg1: i32) -> (i32, i32) {
    %c0_i32 = arith.constant 0 : i32
    %c0_i32_0 = arith.constant 0 : i32
    %c0_i32_1 = arith.constant 0 : i32
    return %c0_i32, %c0_i32_0 : i32, i32
  }
  func.func @transform_3(%arg0: i32, %arg1: i32) -> (i32, i32) {
    %c0_i32 = arith.constant 0 : i32
    %c0_i32_0 = arith.constant 0 : i32
    return %c0_i32, %arg1 : i32, i32
  }
  func.func @transform_4(%arg0: i32, %arg1: i32) -> (i32, i32) {
    %c0_i32 = arith.constant 0 : i32
    %c0_i32_0 = arith.constant 0 : i32
    return %c0_i32, %arg1 : i32, i32
  }
  func.func @transform_5(%arg0: i32, %arg1: i32) -> (i32, i32) {
    %c0_i32 = arith.constant 0 : i32
    return %arg0, %arg1 : i32, i32
  }
}

</mosaic_0001>

<llo_original>
// kernel: tpu_custom_call.1
$region0: #{tpu_custom_call.1}
  #allocation0 [shape = 'u32[]', space=smem, size = 0x4, offset = 0x4, fixed_abs, tag = 'smem constant byte address 0x4 - core index']
  #allocation1 [shape = 'u32[144,128]{1,0:T(1,128)}', space=vmem, size = 0x12000, scoped, tag = 'internal scratch']
  #allocation2 [shape = 'bf16[8,128]{1,0:T(8,128)(2,1)}', space=vmem, size = 0x800, scoped, tag = 'scratch operand']
  %s0 = inlined_call_operand.vmem [shape: f32[8,32], index: 0, kind: input, shape index: {}]
  %s1 = inlined_call_operand.vmem [shape: bf16[32,128], index: 1, kind: input, shape index: {}]
  %s2 = inlined_call_operand.vmem [shape: f32[1,128], index: 2, kind: input, shape index: {}]
  %s3 = inlined_call_operand.vmem [shape: bf16[128,64], index: 3, kind: input, shape index: {}]
  %s4 = inlined_call_operand.vmem [shape: f32[1,64], index: 4, kind: input, shape index: {}]
  %s5 = inlined_call_operand.hbm [shape: f32[8,64], index: 5, kind: output, shape index: {}]
  %s6 = sld [smem:[#allocation0]]
  $region34: #{tpu_custom_call.1} parent=0
    _
  %s8 = ssub.s32 1, %s6
  %s9 = scalar_select 0, %s8, %s6
  $region1: #{tpu_custom_call.1} parent=0
    #allocation3 [shape = 'u8[4096]{0}', space=vmem, size = 0x1000, scoped, tag = 'output window, operand 0, single buffered']
    #allocation4 [shape = 's32[1]{0}', space=sflag, size = 0x4, scoped, tag = 'scoped memory for tpu_custom_call.1']
    %10 = vsyncpa [#allocation4], 0
    // Predicated region
    $region2: #{tpu_custom_call.1} parent=1 // pred_check
      _
    $region3: #{tpu_custom_call.1} parent=1 // pred_check_branch
      %12 = sbr.rel (0) target = $region5
    $region4: #{tpu_custom_call.1} parent=1 // pred_region
      _
    $region5: #{tpu_custom_call.1} parent=1 // pred_fallthru
      _
    // Predicated region
    $region6: #{tpu_custom_call.1} parent=1 // pred_check
      _
    $region7: #{tpu_custom_call.1} parent=1 // pred_check_branch
      %14 = sbr.rel (0) target = $region9
    $region8: #{tpu_custom_call.1} parent=1 // pred_region
      _
    $region9: #{tpu_custom_call.1} parent=1 // pred_fallthru
      _
    // Predicated region
    $region10: #{tpu_custom_call.1} parent=1 // pred_check
      _
    $region11: #{tpu_custom_call.1} parent=1 // pred_check_branch
      %16 = sbr.rel (0) target = $region13
    $region12: #{tpu_custom_call.1} parent=1 // pred_region
      _
    $region13: #{tpu_custom_call.1} parent=1 // pred_fallthru
      _
    // Predicated region
    $region14: #{tpu_custom_call.1} parent=1 // pred_check
      _
    $region15: #{tpu_custom_call.1} parent=1 // pred_check_branch
      %18 = sbr.rel (0) target = $region17
    $region16: #{tpu_custom_call.1} parent=1 // pred_region
      _
    $region17: #{tpu_custom_call.1} parent=1 // pred_fallthru
      _
    // Predicated region
    $region18: #{tpu_custom_call.1} parent=1 // pred_check
      _
    $region19: #{tpu_custom_call.1} parent=1 // pred_check_branch
      %20 = sbr.rel (0) target = $region21
    $region20: #{tpu_custom_call.1} parent=1 // pred_region
      _
    $region21: #{tpu_custom_call.1} parent=1 // pred_fallthru
      _
    %p22 = scmp.eq.s32.totalorder 0, 0
    // Predicated region
    $region22: #{tpu_custom_call.1} parent=1 // pred_check
      %p23 = pneg %p22
    $region23: #{tpu_custom_call.1} parent=1 // pred_check_branch
      %25 = sbr.rel (%p23) target = $region25
    $region24: #{tpu_custom_call.1} parent=1 // pred_region
      %v26 = vld [vmem:[%s0] sm:$0xff]
      %v27 = vpack.c.bf16 %v26, %v26
      %v28 = vld [vmem:[%s1] sm:$0xf]
      %v29 = vld [vmem:[%s1 + $0x4] sm:$0xf]
      %v30 = vld [vmem:[%s1 + $0x8] sm:$0xf]
      %v31 = vld [vmem:[%s1 + $0xc] sm:$0xf]
      %v32 = vld [vmem:[%s2] sm:$0x1]
      %v34 = vlaneseq
      %v35 = vshrl.u32 %v34, 7
      %v36 = vsub.s32 0, %v35
      %v37 = vrot.slane %v32, %v36
      %v43 = vunpack.c.l.b16 %v28
      %v44 = vunpack.c.l.b16 %v29
      %v45 = vunpack.c.l.b16 %v30
      %v46 = vunpack.c.l.b16 %v31
      %v47 = vpack.c.b16 %v44, %v43
      %v48 = vpack.c.b16 %v46, %v45
      %vm51 = vcmask 261120
      %v53 = vsel %vm51, %v27, 0
      %55 = vmatprep.subr.bf16.mxu0 0
      %56 = vmatpush1.bf16.msra.mxu0 0
      %57 = vmatprep.subr.bf16.mxu0 0
      %58 = vmatpush1.bf16.msra.mxu0 0
      %59 = vmatprep.subr.bf16.mxu0 0
      %60 = vmatpush1.bf16.msra.mxu0 0
      %61 = vmatprep.subr.bf16.mxu0 0
      %62 = vmatpush1.bf16.msra.mxu0 0
      %63 = vmatprep.subr.bf16.mxu0 0
      %64 = vmatpush1.bf16.msra.mxu0 0
      %65 = vmatprep.subr.bf16.mxu0 0
      %66 = vmatpush1.bf16.msra.mxu0 0
      %67 = vmatprep.subr.bf16.mxu0 0
      %68 = vmatpush1.bf16.msra.mxu0 %v48
      %69 = vmatprep.subr.bf16.mxu0 0
      %70 = vmatpush1.bf16.msra.mxu0 %v47
      %71 = vmatprep.subr.bf16.mxu0 0
      %72 = vmatpush2.bf16.msra.mxu0 0
      %73 = vmatprep.subr.bf16.mxu0 0
      %74 = vmatpush2.bf16.msra.mxu0 0
      %75 = vmatprep.subr.bf16.mxu0 0
      %76 = vmatpush2.bf16.msra.mxu0 0
      %77 = vmatprep.subr.bf16.mxu0 0
      %78 = vmatpush2.bf16.msra.mxu0 0
      %79 = vmatprep.subr.bf16.mxu0 0
      %80 = vmatpush2.bf16.msra.mxu0 0
      %81 = vmatprep.subr.bf16.mxu0 0
      %82 = vmatpush2.bf16.msra.mxu0 0
      %83 = vmatprep.subr.bf16.mxu0 0
      %84 = vmatpush2.bf16.msra.mxu0 0
      %85 = vmatprep.subr.bf16.mxu0 0
      %86 = vmatpush2.bf16.msra.mxu0 0
      %87 = vmatprep.mubr.bf16.mxu0 0
      %88 = vmatmul.mubr.bf16.gmra.mxu0 %v53
      %v89 = vpop.f32.mrf.mxu0
      %v90 = vadd.f32 %v37, %v89
      %v91 = vpop.f32.mrf.mxu0
      %v92 = vpop.f32.mrf.mxu0
      %v93 = vpop.f32.mrf.mxu0
      %94 = vdwg.mxu0
      %95 = vadd.xlane.f32.xlu0 %v90
      %v96 = vpop.xlane.xlu0 %95
      %v97 = vmul.f32 %v90, %v90
      %98 = vadd.xlane.f32.xlu0 %v97
      %v99 = vpop.xlane.xlu0 %98
      %v100 = vmul.f32 %v96, 0.0078125
      %v101 = vmul.f32 %v99, 0.0078125
      %v102 = vmul.f32 %v100, %v100
      %v103 = vsub.f32 %v101, %v102
      %v104 = vmax.f32 %v103, 0.0
      %v105 = vsub.f32 %v90, %v100
      %v106 = vadd.f32 %v104, 1e-05
      %v107 = vrsqrt.pop %v106
      %v108 = vmul.f32 %v105, %v107
      %v109 = vmul.f32 %v108, 0.01
      %v110 = vmax.f32 %v108, %v109
      %v111 = vpack.c.bf16 %v110, %v110
      %112 = vst [vmem:[#allocation2] sm:$0xf] %v111
    $region25: #{tpu_custom_call.1} parent=1 // pred_fallthru
      _
    %v113 = vld [vmem:[#allocation2] sm:$0xf]
    %v114 = vld [vmem:[%s3] sm:$0xf]
    %v115 = vld [vmem:[%s3 + $0x4] sm:$0xf]
    %v116 = vld [vmem:[%s3 + $0x8] sm:$0xf]
    %v117 = vld [vmem:[%s3 + $0xc] sm:$0xf]
    %v118 = vld [vmem:[%s3 + $0x10] sm:$0xf]
    %v119 = vld [vmem:[%s3 + $0x14] sm:$0xf]
    %v120 = vld [vmem:[%s3 + $0x18] sm:$0xf]
    %v121 = vld [vmem:[%s3 + $0x1c] sm:$0xf]
    %v122 = vld [vmem:[%s3 + $0x20] sm:$0xf]
    %v123 = vld [vmem:[%s3 + $0x24] sm:$0xf]
    %v124 = vld [vmem:[%s3 + $0x28] sm:$0xf]
    %v125 = vld [vmem:[%s3 + $0x2c] sm:$0xf]
    %v126 = vld [vmem:[%s3 + $0x30] sm:$0xf]
    %v127 = vld [vmem:[%s3 + $0x34] sm:$0xf]
    %v128 = vld [vmem:[%s3 + $0x38] sm:$0xf]
    %v129 = vld [vmem:[%s3 + $0x3c] sm:$0xf]
    %v130 = vld [vmem:[%s4] sm:$0x1]
    %v132 = vlaneseq
    %v133 = vshrl.u32 %v132, 7
    %v134 = vsub.s32 0, %v133
    %v135 = vrot.slane %v130, %v134
    %v153 = vunpack.c.l.b16 %v114
    %v154 = vunpack.c.l.b16 %v115
    %v155 = vunpack.c.l.b16 %v116
    %v156 = vunpack.c.l.b16 %v117
    %v157 = vunpack.c.l.b16 %v118
    %v158 = vunpack.c.l.b16 %v119
    %v159 = vunpack.c.l.b16 %v120
    %v160 = vunpack.c.l.b16 %v121
    %v161 = vunpack.c.l.b16 %v122
    %v162 = vunpack.c.l.b16 %v123
    %v163 = vunpack.c.l.b16 %v124
    %v164 = vunpack.c.l.b16 %v125
    %v165 = vunpack.c.l.b16 %v126
    %v166 = vunpack.c.l.b16 %v127
    %v167 = vunpack.c.l.b16 %v128
    %v168 = vunpack.c.l.b16 %v129
    %v169 = vpack.c.b16 %v154, %v153
    %v170 = vpack.c.b16 %v156, %v155
    %v171 = vpack.c.b16 %v158, %v157
    %v172 = vpack.c.b16 %v160, %v159
    %v173 = vpack.c.b16 %v162, %v161
    %v174 = vpack.c.b16 %v164, %v163
    %v175 = vpack.c.b16 %v166, %v165
    %v176 = vpack.c.b16 %v168, %v167
    %185 = vmatprep.subr.bf16.mxu0 0
    %186 = vmatpush1.bf16.msra.mxu0 %v176
    %187 = vmatprep.subr.bf16.mxu0 0
    %188 = vmatpush1.bf16.msra.mxu0 %v175
    %189 = vmatprep.subr.bf16.mxu0 0
    %190 = vmatpush1.bf16.msra.mxu0 %v174
    %191 = vmatprep.subr.bf16.mxu0 0
    %192 = vmatpush1.bf16.msra.mxu0 %v173
    %193 = vmatprep.subr.bf16.mxu0 0
    %194 = vmatpush1.bf16.msra.mxu0 %v172
    %195 = vmatprep.subr.bf16.mxu0 0
    %196 = vmatpush1.bf16.msra.mxu0 %v171
    %197 = vmatprep.subr.bf16.mxu0 0
    %198 = vmatpush1.bf16.msra.mxu0 %v170
    %199 = vmatprep.subr.bf16.mxu0 0
    %200 = vmatpush1.bf16.msra.mxu0 %v169
    %201 = vmatprep.subr.bf16.mxu0 0
    %202 = vmatpush2.bf16.msra.mxu0 0
    %203 = vmatprep.subr.bf16.mxu0 0
    %204 = vmatpush2.bf16.msra.mxu0 0
    %205 = vmatprep.subr.bf16.mxu0 0
    %206 = vmatpush2.bf16.msra.mxu0 0
    %207 = vmatprep.subr.bf16.mxu0 0
    %208 = vmatpush2.bf16.msra.mxu0 0
    %209 = vmatprep.subr.bf16.mxu0 0
    %210 = vmatpush2.bf16.msra.mxu0 0
    %211 = vmatprep.subr.bf16.mxu0 0
    %212 = vmatpush2.bf16.msra.mxu0 0
    %213 = vmatprep.subr.bf16.mxu0 0
    %214 = vmatpush2.bf16.msra.mxu0 0
    %215 = vmatprep.subr.bf16.mxu0 0
    %216 = vmatpush2.bf16.msra.mxu0 0
    %217 = vmatprep.mubr.bf16.mxu0 0
    %218 = vmatmul.mubr.bf16.gmra.mxu0 %v113
    %v219 = vpop.f32.mrf.mxu0
    %v220 = vadd.f32 %v135, %v219
    %v221 = vpop.f32.mrf.mxu0
    %v222 = vpop.f32.mrf.mxu0
    %v223 = vpop.f32.mrf.mxu0
    %224 = vdwg.mxu0
    %vm225 = vcmask 523264
    %226 = vst.msk [vmem:[#allocation3] sm:$0xff] %vm225, %v220
    // Predicated region
    $region26: #{tpu_custom_call.1} parent=1 // pred_check
      _
    $region27: #{tpu_custom_call.1} parent=1 // pred_check_branch
      %228 = sbr.rel (0) target = $region29
    $region28: #{tpu_custom_call.1} parent=1 // pred_region
      %s230 = ssub.s32 128, 128
      %231 = vsyncadd [#allocation4], %s230
      %s233 = sshll.u32 [#allocation3], 4
      %s234 = int_to_ptr.vmem [resolvable:$true] %s233
      %236 = dma.vmem_to_hbm [thread:$0]  %s234, 128, %s5, [#allocation4]
    $region29: #{tpu_custom_call.1} parent=1 // pred_fallthru
      _
    // Predicated region
    $region30: #{tpu_custom_call.1} parent=1 // pred_check
      _
    $region31: #{tpu_custom_call.1} parent=1 // pred_check_branch
      %238 = sbr.rel (0) target = $region33
    $region32: #{tpu_custom_call.1} parent=1 // pred_region
      %239 = dma.done [#allocation4], 128
    $region33: #{tpu_custom_call.1} parent=1 // pred_fallthru
      _
    %240 = vsyncpa [#allocation4], 1

</llo_original>
